<compile_context>
chip_gen: v7x
topology: tpu7x:2x2x1
jax: 0.10.0
libtpu: 0.0.40
codegen_flags: <defaults>
</compile_context>

<pallas_src>
import functools

import jax
import jax.numpy as jnp
from jax.experimental import pallas as pl
from jax.experimental.pallas import tpu as pltpu


_NEG_FILL = -1e30  # finite large-negative pad value (avoids inf - inf = nan)


def _round_up(x, m):
    return (x + m - 1) // m * m


def _ce_kernel(logits_ref, labels_ref, out_ref, m_ref, l_ref, t_ref, *,
               batch, num_classes, tile_rows, tile_c, scale):
    """Grid = (row tiles [parallel], class tiles [arbitrary, innermost]).

    Keeps running (max, sumexp, target-logit) per row across class tiles; at
    the last class tile reduces this row tile's losses into one per-tile
    partial (sign and 1/B already folded in), stored as a lane-dense (8, 128)
    slab so the store is an unmasked full-vreg write.
    """
    i = pl.program_id(0)
    j = pl.program_id(1)

    @pl.when(j == 0)
    def _():
        m_ref[...] = jnp.full(m_ref.shape, _NEG_FILL, jnp.float32)
        l_ref[...] = jnp.zeros(l_ref.shape, jnp.float32)
        t_ref[...] = jnp.zeros(t_ref.shape, jnp.float32)

    x = logits_ref[...].astype(jnp.float32)               # upcast AFTER the load
    lbl = labels_ref[...]                                  # (TB, 1) int32
    tb, tc = x.shape

    # Global class index of every lane of this tile; a (1, TC) iota broadcasts
    # against the (TB, 1) label column (no full-tile int32 iota).
    col = jax.lax.broadcasted_iota(jnp.int32, (1, tc), 1) + j * tile_c
    x = jnp.where(col < num_classes, x, _NEG_FILL)         # mask class-axis padding

    # Target-logit contribution from this class tile (one-hot masked reduce).
    is_tgt = col == lbl                                    # (TB, TC) via broadcast
    t_ref[...] += jnp.sum(jnp.where(is_tgt, x, 0.0), axis=1, keepdims=True)

    # Online (streaming) logsumexp update.
    m_prev = m_ref[...]
    m_new = jnp.maximum(m_prev, jnp.max(x, axis=1, keepdims=True))
    l_ref[...] = (l_ref[...] * jnp.exp(m_prev - m_new)
                  + jnp.sum(jnp.exp(x - m_new), axis=1, keepdims=True))
    m_ref[...] = m_new

    @pl.when(j == pl.num_programs(1) - 1)
    def _():
        lse = m_ref[...] + jnp.log(l_ref[...])             # (TB, 1)
        row_loss = lse - t_ref[...]
        # Mask rows of a partial last batch tile (select => NaN-safe).
        ridx = jax.lax.broadcasted_iota(jnp.int32, (tb, 1), 0) + i * tile_rows
        row_loss = jnp.where(ridx < batch, row_loss, 0.0)
        partial = jnp.sum(row_loss) * scale
        out_ref[...] = jnp.broadcast_to(partial, out_ref.shape)


def ce_loss(logits, label, *, target=False, tile_rows=None, tile_c=None):
    """Pallas equivalent of CE_loss(target)(logits, label).

    logits: (B, C) or (C,) float (any float dtype; streamed in caller dtype)
    label : (B,) or scalar int
    returns: float32 scalar
    """
    logits = jnp.asarray(logits)                 # keep caller dtype (bf16 stays bf16)
    if logits.ndim == 1:
        logits = logits[None, :]
    label = jnp.asarray(label, jnp.int32).reshape(-1)[:, None]   # (B, 1), tiny
    B, C = logits.shape

    c_lanes = _round_up(C, 128)                  # in-VMEM lane footprint of one row
    target_tile_f32 = 6 << 20                    # ~6 MiB of f32 working tile / step

    # --- class-axis tiling decision -----------------------------------------
    if tile_c is None:
        if 8 * c_lanes * 4 <= target_tile_f32:
            tile_c = C                           # whole class axis in one block
        else:
            # LM-vocab scale: stream the class axis with online accumulators
            tile_c = max(128, (target_tile_f32 // (8 * 4)) // 128 * 128)
    class_tiled = (tile_c != C)
    if class_tiled:
        tile_c = min(_round_up(tile_c, 128), c_lanes)   # blocked dim must be lane-aligned

    # --- batch-axis tiling ----------------------------------------------------
    if tile_rows is None:
        if class_tiled:
            tile_rows = 8
        else:
            tile_rows = max(8, min(4096, (target_tile_f32 // (c_lanes * 4)) // 8 * 8))
    if B < 8:
        tile_rows = B                            # block == full batch dim (allowed)
    else:
        tile_rows = max(8, _round_up(tile_rows, 8))
        tile_rows = min(tile_rows, _round_up(B, 8))
        if B > 8 and pl.cdiv(B, tile_rows) < 2:
            # v7x megacore: ensure at least 2 parallel row tiles when there is work
            tile_rows = max(8, _round_up(pl.cdiv(B, 2), 8))

    grid = (pl.cdiv(B, tile_rows), pl.cdiv(C, tile_c))

    logits_spec = pl.BlockSpec((tile_rows, tile_c), lambda i, j: (i, j))
    if class_tiled:
        # deeper input pipelining for the streaming huge-vocab reduction
        logits_spec = pl.BlockSpec((tile_rows, tile_c), lambda i, j: (i, j),
                                   pipeline_mode=pl.Buffered(3))

    # fold reduction='mean' and the (-loss) branch into the kernel
    scale = (1.0 if target else -1.0) / float(B)
    kernel = functools.partial(
        _ce_kernel, batch=B, num_classes=C,
        tile_rows=tile_rows, tile_c=tile_c, scale=scale,
    )

    partials = pl.pallas_call(
        kernel,
        out_shape=jax.ShapeDtypeStruct((grid[0], 8, 128), jnp.float32),
        grid=grid,
        in_specs=[
            logits_spec,                                        # logits tile (caller dtype)
            pl.BlockSpec((tile_rows, 1), lambda i, j: (i, 0)),  # label column
        ],
        out_specs=pl.BlockSpec((1, 8, 128), lambda i, j: (i, 0, 0)),
        scratch_shapes=[pltpu.VMEM((tile_rows, 1), jnp.float32)] * 3,  # m, l, tgt
        compiler_params=pltpu.CompilerParams(
            dimension_semantics=("parallel", "arbitrary"),
            vmem_limit_bytes=48 * 1024 * 1024,
        ),
    )(logits, label)

    # tiny final combine over per-row-tile partials (sign / mean already applied)
    return jnp.sum(partials[:, 0, 0])


class CELoss:
    """Mirror of the PyTorch CE_loss module."""

    def __init__(self, target=False):
        self.target = target

    def __call__(self, logits, label):
        return ce_loss(logits, label, target=self.target)


def _reference(logits, label, target=False):
    logits = jnp.asarray(logits, jnp.float32)
    if logits.ndim == 1:
        logits = logits[None, :]
    label = jnp.asarray(label, jnp.int32).reshape(-1)
    m = jnp.max(logits, axis=-1, keepdims=True)
    lse = (m + jnp.log(jnp.sum(jnp.exp(logits - m), axis=-1, keepdims=True)))[:, 0]
    tgt = jnp.take_along_axis(logits, label[:, None], axis=-1)[:, 0]
    loss = jnp.mean(lse - tgt)
    return loss if target else -loss


if __name__ == "__main__":
    key = jax.random.PRNGKey(0)
    k1, k2, k3, k4 = jax.random.split(key, 4)

    # small shapes consistent with the module: batch=2, num_classes=10
    B, C = 2, 10
    logits = jax.random.normal(k1, (B, C), dtype=jnp.float32) * 3.0
    label = jax.random.randint(k2, (B,), 0, C, dtype=jnp.int32)

    out_untgt = jax.block_until_ready(CELoss(target=False)(logits, label))
    ref_untgt = _reference(logits, label, target=False)
    assert jnp.allclose(out_untgt, ref_untgt, atol=1e-5), (out_untgt, ref_untgt)

    out_tgt = jax.block_until_ready(CELoss(target=True)(logits, label))
    ref_tgt = _reference(logits, label, target=True)
    assert jnp.allclose(out_tgt, ref_tgt, atol=1e-5), (out_tgt, ref_tgt)

    # multi-row-tile path: ragged batch tail, C % 128 != 0, bf16 streamed as-is
    B2, C2 = 20, 257
    logits2_f32 = jax.random.normal(k3, (B2, C2), dtype=jnp.float32) * 2.0
    logits2 = logits2_f32.astype(jnp.bfloat16)
    label2 = jax.random.randint(k4, (B2,), 0, C2, dtype=jnp.int32)
    out2 = jax.block_until_ready(ce_loss(logits2, label2, target=False, tile_rows=8))
    ref2 = _reference(logits2.astype(jnp.float32), label2, target=False)
    assert jnp.allclose(out2, ref2, atol=2e-2), (out2, ref2)

    # force the streaming class-tiled (huge-vocab) path on a small problem
    out3 = jax.block_until_ready(
        ce_loss(logits2_f32, label2, target=True, tile_c=128))
    ref3 = _reference(logits2_f32, label2, target=True)
    assert jnp.allclose(out3, ref3, atol=1e-4), (out3, ref3)

    print("KERNEL_OK")
</pallas_src>

<mosaic_0001>
module attributes {stable_mosaic.version = 11 : i64} {
  func.func @_ce_kernel(%arg0: i32, %arg1: i32, %arg2: memref<2x10xf32, #tpu.memory_space<vmem>>, %arg3: memref<2x1xi32, #tpu.memory_space<vmem>>, %arg4: memref<1x8x128xf32, #tpu.memory_space<vmem>>, %arg5: memref<2x1xf32, #tpu.memory_space<vmem>>, %arg6: memref<2x1xf32, #tpu.memory_space<vmem>>, %arg7: memref<2x1xf32, #tpu.memory_space<vmem>>) attributes {dimension_semantics = [#tpu.dimension_semantics<parallel>, #tpu.dimension_semantics<arbitrary>], iteration_bounds = array<i64: 1, 1>, scalar_prefetch = 0 : i64, scratch_operands = 3 : i64, tpu.core_type = #tpu.core_type<tc>, window_params = [{transform_indices = @transform_0, window_bounds = array<i64: 2, 10>}, {transform_indices = @transform_1, window_bounds = array<i64: 2, 1>}, {transform_indices = @transform_2, window_bounds = array<i64: 1, 8, 128>}]} {
    %c0_i32 = arith.constant 0 : i32
    %0 = arith.cmpi eq, %arg1, %c0_i32 : i32
    %1 = arith.extui %0 : i1 to i32
    %c0_i32_0 = arith.constant 0 : i32
    %2 = arith.cmpi ne, %1, %c0_i32_0 : i32
    scf.if %2 {
      %cst_23 = arith.constant -1.000000e+30 : f32
      %44 = vector.broadcast %cst_23 : f32 to vector<2x1xf32>
      %c0_24 = arith.constant 0 : index
      %c0_25 = arith.constant 0 : index
      %45 = vector.load %arg5[%c0_24, %c0_25] : memref<2x1xf32, #tpu.memory_space<vmem>>, vector<2x1xf32>
      tpu.vector_store %arg5[%c0_24, %c0_25], %44 {strides = array<i32>} : memref<2x1xf32, #tpu.memory_space<vmem>>, vector<2x1xf32>,
      %cst_26 = arith.constant 0.000000e+00 : f32
      %46 = vector.broadcast %cst_26 : f32 to vector<2x1xf32>
      %c0_27 = arith.constant 0 : index
      %c0_28 = arith.constant 0 : index
      %47 = vector.load %arg6[%c0_27, %c0_28] : memref<2x1xf32, #tpu.memory_space<vmem>>, vector<2x1xf32>
      tpu.vector_store %arg6[%c0_27, %c0_28], %46 {strides = array<i32>} : memref<2x1xf32, #tpu.memory_space<vmem>>, vector<2x1xf32>,
      %cst_29 = arith.constant 0.000000e+00 : f32
      %48 = vector.broadcast %cst_29 : f32 to vector<2x1xf32>
      %c0_30 = arith.constant 0 : index
      %c0_31 = arith.constant 0 : index
      %49 = vector.load %arg7[%c0_30, %c0_31] : memref<2x1xf32, #tpu.memory_space<vmem>>, vector<2x1xf32>
      tpu.vector_store %arg7[%c0_30, %c0_31], %48 {strides = array<i32>} : memref<2x1xf32, #tpu.memory_space<vmem>>, vector<2x1xf32>,
    } else {
    }
    %c0 = arith.constant 0 : index
    %c0_1 = arith.constant 0 : index
    %3 = vector.load %arg2[%c0, %c0_1] : memref<2x10xf32, #tpu.memory_space<vmem>>, vector<2x10xf32>
    %c0_2 = arith.constant 0 : index
    %c0_3 = arith.constant 0 : index
    %4 = vector.load %arg3[%c0_2, %c0_3] : memref<2x1xi32, #tpu.memory_space<vmem>>, vector<2x1xi32>
    %5 = tpu.iota {dimensions = array<i32: 1>} : vector<1x10xi32>
    %c10_i32 = arith.constant 10 : i32
    %6 = arith.muli %arg1, %c10_i32 : i32
    %7 = vector.broadcast %6 : i32 to vector<1x10xi32>
    %8 = arith.addi %5, %7 : vector<1x10xi32>
    %c10_i32_4 = arith.constant 10 : i32
    %9 = vector.broadcast %c10_i32_4 : i32 to vector<1x10xi32>
    %10 = arith.cmpi slt, %8, %9 : vector<1x10xi32>
    %cst = arith.constant -1.000000e+30 : f32
    %11 = vector.shape_cast %10 : vector<1x10xi1> to vector<1x10xi1>
    %12 = vector.broadcast %11 : vector<1x10xi1> to vector<2x10xi1>
    %13 = vector.broadcast %cst : f32 to vector<2x10xf32>
    %14 = arith.select %12, %3, %13 : vector<2x10xi1>, vector<2x10xf32>
    %15 = vector.broadcast %8 : vector<1x10xi32> to vector<2x10xi32>
    %16 = vector.broadcast %4 : vector<2x1xi32> to vector<2x10xi32>
    %17 = arith.cmpi eq, %15, %16 : vector<2x10xi32>
    %c0_5 = arith.constant 0 : index
    %c0_6 = arith.constant 0 : index
    %18 = vector.load %arg7[%c0_5, %c0_6] : memref<2x1xf32, #tpu.memory_space<vmem>>, vector<2x1xf32>
    %cst_7 = arith.constant 0.000000e+00 : f32
    %19 = vector.broadcast %cst_7 : f32 to vector<2x10xf32>
    %20 = arith.select %17, %14, %19 : vector<2x10xi1>, vector<2x10xf32>
    %cst_8 = arith.constant dense<0.000000e+00> : vector<2xf32>
    %21 = vector.multi_reduction <add>, %20, %cst_8 [1] : vector<2x10xf32> to vector<2xf32>
    %22 = vector.shape_cast %21 : vector<2xf32> to vector<2x1xf32>
    %23 = arith.addf %18, %22 : vector<2x1xf32>
    %c0_9 = arith.constant 0 : index
    %c0_10 = arith.constant 0 : index
    %24 = vector.load %arg7[%c0_9, %c0_10] : memref<2x1xf32, #tpu.memory_space<vmem>>, vector<2x1xf32>
    tpu.vector_store %arg7[%c0_9, %c0_10], %23 {strides = array<i32>} : memref<2x1xf32, #tpu.memory_space<vmem>>, vector<2x1xf32>,
    %c0_11 = arith.constant 0 : index
    %c0_12 = arith.constant 0 : index
    %25 = vector.load %arg5[%c0_11, %c0_12] : memref<2x1xf32, #tpu.memory_space<vmem>>, vector<2x1xf32>
    %cst_13 = arith.constant dense<0xFF800000> : vector<2xf32>
    %26 = vector.multi_reduction <maximumf>, %14, %cst_13 [1] : vector<2x10xf32> to vector<2xf32>
    %27 = vector.shape_cast %26 : vector<2xf32> to vector<2x1xf32>
    %28 = arith.maximumf %25, %27 : vector<2x1xf32>
    %c0_14 = arith.constant 0 : index
    %c0_15 = arith.constant 0 : index
    %29 = vector.load %arg6[%c0_14, %c0_15] : memref<2x1xf32, #tpu.memory_space<vmem>>, vector<2x1xf32>
    %30 = arith.subf %25, %28 : vector<2x1xf32>
    %31 = math.exp %30 : vector<2x1xf32>
    %32 = arith.mulf %29, %31 : vector<2x1xf32>
    %33 = vector.broadcast %28 : vector<2x1xf32> to vector<2x10xf32>
    %34 = arith.subf %14, %33 : vector<2x10xf32>
    %35 = math.exp %34 : vector<2x10xf32>
    %cst_16 = arith.constant dense<0.000000e+00> : vector<2xf32>
    %36 = vector.multi_reduction <add>, %35, %cst_16 [1] : vector<2x10xf32> to vector<2xf32>
    %37 = vector.shape_cast %36 : vector<2xf32> to vector<2x1xf32>
    %38 = arith.addf %32, %37 : vector<2x1xf32>
    %c0_17 = arith.constant 0 : index
    %c0_18 = arith.constant 0 : index
    %39 = vector.load %arg6[%c0_17, %c0_18] : memref<2x1xf32, #tpu.memory_space<vmem>>, vector<2x1xf32>
    tpu.vector_store %arg6[%c0_17, %c0_18], %38 {strides = array<i32>} : memref<2x1xf32, #tpu.memory_space<vmem>>, vector<2x1xf32>,
    %c0_19 = arith.constant 0 : index
    %c0_20 = arith.constant 0 : index
    %40 = vector.load %arg5[%c0_19, %c0_20] : memref<2x1xf32, #tpu.memory_space<vmem>>, vector<2x1xf32>
    tpu.vector_store %arg5[%c0_19, %c0_20], %28 {strides = array<i32>} : memref<2x1xf32, #tpu.memory_space<vmem>>, vector<2x1xf32>,
    %c0_i32_21 = arith.constant 0 : i32
    %41 = arith.cmpi eq, %arg1, %c0_i32_21 : i32
    %42 = arith.extui %41 : i1 to i32
    %c0_i32_22 = arith.constant 0 : i32
    %43 = arith.cmpi ne, %42, %c0_i32_22 : i32
    scf.if %43 {
      %c0_23 = arith.constant 0 : index
      %c0_24 = arith.constant 0 : index
      %44 = vector.load %arg5[%c0_23, %c0_24] : memref<2x1xf32, #tpu.memory_space<vmem>>, vector<2x1xf32>
      %c0_25 = arith.constant 0 : index
      %c0_26 = arith.constant 0 : index
      %45 = vector.load %arg6[%c0_25, %c0_26] : memref<2x1xf32, #tpu.memory_space<vmem>>, vector<2x1xf32>
      %46 = math.log %45 : vector<2x1xf32>
      %47 = arith.addf %44, %46 : vector<2x1xf32>
      %c0_27 = arith.constant 0 : index
      %c0_28 = arith.constant 0 : index
      %48 = vector.load %arg7[%c0_27, %c0_28] : memref<2x1xf32, #tpu.memory_space<vmem>>, vector<2x1xf32>
      %49 = arith.subf %47, %48 : vector<2x1xf32>
      %50 = tpu.iota {dimensions = array<i32: 0>} : vector<2x1xi32>
      %c2_i32 = arith.constant 2 : i32
      %51 = arith.muli %arg0, %c2_i32 : i32
      %52 = vector.broadcast %51 : i32 to vector<2x1xi32>
      %53 = arith.addi %50, %52 : vector<2x1xi32>
      %c2_i32_29 = arith.constant 2 : i32
      %54 = vector.broadcast %c2_i32_29 : i32 to vector<2x1xi32>
      %55 = arith.cmpi slt, %53, %54 : vector<2x1xi32>
      %cst_30 = arith.constant 0.000000e+00 : f32
      %56 = vector.broadcast %cst_30 : f32 to vector<2x1xf32>
      %57 = arith.select %55, %49, %56 : vector<2x1xi1>, vector<2x1xf32>
      %58 = vector.shape_cast %57 : vector<2x1xf32> to vector<1x2x1xf32>
      %cst_31 = arith.constant dense<0.000000e+00> : vector<1xf32>
      %59 = vector.multi_reduction <add>, %58, %cst_31 [1, 2] : vector<1x2x1xf32> to vector<1xf32>
      %60 = vector.shape_cast %59 : vector<1xf32> to vector<1x1x1xf32>
      %61 = vector.extract %60[0, 0, 0] : f32 from vector<1x1x1xf32>
      %cst_32 = arith.constant -5.000000e-01 : f32
      %62 = arith.mulf %61, %cst_32 : f32
      %63 = vector.broadcast %62 : f32 to vector<1x8x128xf32>
      %c0_33 = arith.constant 0 : index
      %c0_34 = arith.constant 0 : index
      %c0_35 = arith.constant 0 : index
      %64 = vector.load %arg4[%c0_33, %c0_34, %c0_35] : memref<1x8x128xf32, #tpu.memory_space<vmem>>, vector<1x8x128xf32>
      tpu.vector_store %arg4[%c0_33, %c0_34, %c0_35], %63 {strides = array<i32>} : memref<1x8x128xf32, #tpu.memory_space<vmem>>, vector<1x8x128xf32>,
    } else {
    }
    return
  }
  func.func @transform_0(%arg0: i32, %arg1: i32) -> (i32, i32) {
    %c0_i32 = arith.constant 0 : i32
    return %arg0, %arg1 : i32, i32
  }
  func.func @transform_1(%arg0: i32, %arg1: i32) -> (i32, i32) {
    %c0_i32 = arith.constant 0 : i32
    %c0_i32_0 = arith.constant 0 : i32
    return %arg0, %c0_i32 : i32, i32
  }
  func.func @transform_2(%arg0: i32, %arg1: i32) -> (i32, i32, i32) {
    %c0_i32 = arith.constant 0 : i32
    %c0_i32_0 = arith.constant 0 : i32
    %c0_i32_1 = arith.constant 0 : i32
    return %arg0, %c0_i32, %c0_i32_0 : i32, i32, i32
  }
}

</mosaic_0001>

<llo_original>
// kernel: tpu_custom_call.1
$region0: #{tpu_custom_call.1}
  #allocation0 [shape = 'u32[]', space=smem, size = 0x4, offset = 0x4, fixed_abs, tag = 'smem constant byte address 0x4 - core index']
  #allocation1 [shape = 'u32[144,128]{1,0:T(1,128)}', space=vmem, size = 0x12000, scoped, tag = 'internal scratch']
  #allocation2 [shape = 'f32[2,1]{1,0:T(2,128)}', space=vmem, size = 0x400, scoped, tag = 'scratch operand']
  #allocation3 [shape = 'f32[2,1]{1,0:T(2,128)}', space=vmem, size = 0x400, scoped, tag = 'scratch operand']
  #allocation4 [shape = 'f32[2,1]{1,0:T(2,128)}', space=vmem, size = 0x400, scoped, tag = 'scratch operand']
  %s0 = inlined_call_operand.vmem [shape: f32[2,10], index: 0, kind: input, shape index: {}]
  %s1 = inlined_call_operand.vmem [shape: s32[2,1], index: 1, kind: input, shape index: {}]
  %s2 = inlined_call_operand.hbm [shape: f32[1,8,128], index: 2, kind: output, shape index: {}]
  %s3 = sld [smem:[#allocation0]]
  $region26: #{tpu_custom_call.1} parent=0
    _
  %s5 = ssub.s32 1, %s3
  %s6 = scalar_select 0, %s5, %s3
  $region1: #{tpu_custom_call.1} parent=0
    #allocation5 [shape = 'u8[4096]{0}', space=vmem, size = 0x1000, scoped, tag = 'output window, operand 0, single buffered']
    #allocation6 [shape = 's32[1]{0}', space=sflag, size = 0x4, scoped, tag = 'scoped memory for tpu_custom_call.1']
    %7 = vsyncpa [#allocation6], 0
    // Predicated region
    $region2: #{tpu_custom_call.1} parent=1 // pred_check
      _
    $region3: #{tpu_custom_call.1} parent=1 // pred_check_branch
      %9 = sbr.rel (0) target = $region5
    $region4: #{tpu_custom_call.1} parent=1 // pred_region
      _
    $region5: #{tpu_custom_call.1} parent=1 // pred_fallthru
      _
    // Predicated region
    $region6: #{tpu_custom_call.1} parent=1 // pred_check
      _
    $region7: #{tpu_custom_call.1} parent=1 // pred_check_branch
      %11 = sbr.rel (0) target = $region9
    $region8: #{tpu_custom_call.1} parent=1 // pred_region
      _
    $region9: #{tpu_custom_call.1} parent=1 // pred_fallthru
      _
    %p12 = scmp.eq.s32.totalorder 0, 0
    // Predicated region
    $region10: #{tpu_custom_call.1} parent=1 // pred_check
      %p13 = pneg %p12
    $region11: #{tpu_custom_call.1} parent=1 // pred_check_branch
      %15 = sbr.rel (%p13) target = $region13
    $region12: #{tpu_custom_call.1} parent=1 // pred_region
      %vm16 = vcmask 1024
      %17 = vst.msk [vmem:[#allocation2] sm:$0x3] %vm16, -1e+30
      %18 = vst.msk [vmem:[#allocation3] sm:$0x3] %vm16, 0.0
      %19 = vst.msk [vmem:[#allocation4] sm:$0x3] %vm16, 0.0
    $region13: #{tpu_custom_call.1} parent=1 // pred_fallthru
      _
    %v20 = vld [vmem:[%s0] sm:$0x3]
    %v21 = vld [vmem:[%s1] sm:$0x3]
    %v22 = vlaneseq
    %v23 = vand.u32 %v22, 127
    %s24 = smul.u32 0, 10
    %v25 = vstv %s24
    %v26 = vadd.s32 %v23, %v25
    %vm27 = vcmp.lt.s32.totalorder %v26, 10
    %v28 = vsel %vm27, 1, 0
    %vm29 = vcmp.eq.s32.totalorder %v28, 1
    %v30 = vsel %vm29, %v20, -1e+30
    %31 = vset.pattern.permute.xlu0 0
    %32 = vperm.xlu0 %31, %v21
    %v33 = vpop.permute.xlu0 %32
    %vm34 = vcmp.eq.s32.totalorder %v26, %v33
    %v35 = vld [vmem:[#allocation4] sm:$0x3]
    %v36 = vsel %vm34, %v30, 0.0
    %vm37 = vcmask 74752
    %v38 = vsel %vm37, %v36, 0.0
    %39 = vadd.xlane.f32.xlu0 %v38
    %v40 = vpop.xlane.xlu0 %39
    %v41 = vadd.f32 %v35, %v40
    %vm42 = vcmask 1024
    %43 = vst.msk [vmem:[#allocation4] sm:$0x3] %vm42, %v41
    %v44 = vld [vmem:[#allocation2] sm:$0x3]
    %v45 = vsel %vm37, %v30, -inf
    %46 = vmax.xlane.f32.xlu0 %v45
    %v47 = vpop.xlane.xlu0 %46
    %v48 = vmax.f32 %v44, %v47
    %v49 = vld [vmem:[#allocation3] sm:$0x3]
    %v50 = vsub.f32 %v44, %v48
    %v51 = vmul.f32 %v50, 1.442695
    %v52 = vpow.pop %v51
    %v53 = vmul.f32 %v49, %v52
    %55 = vset.pattern.permute.xlu0 0
    %56 = vperm.xlu0 %55, %v48
    %v57 = vpop.permute.xlu0 %56
    %v59 = vsub.f32 %v30, %v57
    %v60 = vmul.f32 %v59, 1.442695
    %v61 = vpow.pop %v60
    %v62 = vsel %vm37, %v61, 0.0
    %63 = vadd.xlane.f32.xlu0 %v62
    %v64 = vpop.xlane.xlu0 %63
    %v65 = vadd.f32 %v53, %v64
    %66 = vst.msk [vmem:[#allocation3] sm:$0x3] %vm42, %v65
    %67 = vst.msk [vmem:[#allocation2] sm:$0x3] %vm42, %v48
    // Predicated region
    $region14: #{tpu_custom_call.1} parent=1 // pred_check
      %p68 = pneg %p12
    $region15: #{tpu_custom_call.1} parent=1 // pred_check_branch
      %70 = sbr.rel (%p68) target = $region17
    $region16: #{tpu_custom_call.1} parent=1 // pred_region
      %v71 = vld [vmem:[#allocation2] sm:$0x3]
      %v72 = vld [vmem:[#allocation3] sm:$0x3]
      %v73 = vlog2.pop %v72
      %v74 = vmul.f32 %v73, 0.6931472
      %v75 = vadd.f32 %v71, %v74
      %v76 = vld [vmem:[#allocation4] sm:$0x3]
      %v77 = vsub.f32 %v75, %v76
      %v78 = vlaneseq
      %v79 = vshrl.u32 %v78, 7
      %s80 = smul.u32 0, 2
      %v81 = vstv %s80
      %v82 = vadd.s32 %v79, %v81
      %vm83 = vcmp.lt.s32.totalorder %v82, 2
      %v84 = vsel %vm83, %v77, 0.0
      %v85 = vsel %vm42, %v84, 0.0
      %86 = vadd.xlane.f32.xlu0 %v85
      %v87 = vpop.xlane.xlu0 %86
      %v88 = vrot.slane %v87, 4
      %v89 = vadd.f32 %v87, %v88
      %v90 = vrot.slane %v89, 2
      %v91 = vadd.f32 %v89, %v90
      %v92 = vrot.slane %v91, 1
      %v93 = vadd.f32 %v91, %v92
      %s94 = vtos %v93
      %s95 = smul.f32 %s94, -0.5
      %v96 = vstv %s95
      %97 = vst [vmem:[#allocation5] sm:$0xff] %v96
    $region17: #{tpu_custom_call.1} parent=1 // pred_fallthru
      _
    // Predicated region
    $region18: #{tpu_custom_call.1} parent=1 // pred_check
      _
    $region19: #{tpu_custom_call.1} parent=1 // pred_check_branch
      %99 = sbr.rel (0) target = $region21
    $region20: #{tpu_custom_call.1} parent=1 // pred_region
      %s101 = ssub.s32 128, 128
      %102 = vsyncadd [#allocation6], %s101
      %s104 = sshll.u32 [#allocation5], 4
      %s105 = int_to_ptr.vmem [resolvable:$true] %s104
      %107 = dma.vmem_to_hbm [thread:$0]  %s105, 128, %s2, [#allocation6]
    $region21: #{tpu_custom_call.1} parent=1 // pred_fallthru
      _
    // Predicated region
    $region22: #{tpu_custom_call.1} parent=1 // pred_check
      _
    $region23: #{tpu_custom_call.1} parent=1 // pred_check_branch
      %109 = sbr.rel (0) target = $region25
    $region24: #{tpu_custom_call.1} parent=1 // pred_region
      %110 = dma.done [#allocation6], 128
    $region25: #{tpu_custom_call.1} parent=1 // pred_fallthru
      _
    %111 = vsyncpa [#allocation6], 1

</llo_original>
